<compile_context>
chip_gen: v6e
topology: v6e:2x2x1
jax: 0.10.0
libtpu: 0.0.40
codegen_flags: <defaults>
</compile_context>

<pallas_src>
import jax
import jax.numpy as jnp
from jax.experimental import pallas as pl
from jax.experimental.pallas import tpu as pltpu


def _round_up(x, m):
    return ((x + m - 1) // m) * m


# ----------------------------------------------------------------------------
# Fused Pallas kernel:  o = (p @ W1 + b1) @ W2 + b2
#   p  : [tm, K1]  bf16      (im2col rows, one row per output k x k block)
#   W1 : [K1, NP]  bf16      (conv weight, zero-padded to NP lanes)
#   b1 : [1,  NP]  f32
#   W2 : [NP, NP]  bf16      (tconv weight, zero-padded)
#   b2 : [1,  NP]  f32
#   o  : [tm, NP]  f32       (lane-dense: NP is a multiple of 128)
# ----------------------------------------------------------------------------
def _fused_adaptation_kernel(p_ref, w1_ref, b1_ref, w2_ref, b2_ref, o_ref):
    h = jnp.dot(p_ref[...], w1_ref[...], preferred_element_type=jnp.float32)
    h = h + b1_ref[...]
    o = jnp.dot(h.astype(jnp.bfloat16), w2_ref[...],
                preferred_element_type=jnp.float32)
    o_ref[...] = o + b2_ref[...]


def _fused_matmul(p, w1p, b1p, w2p, b2p, *, tm):
    """p:[M,K1] bf16 -> [M,NP] f32, tiled over M; weights stay VMEM-resident."""
    M, K1 = p.shape
    NP = w1p.shape[1]
    assert M % tm == 0 and NP % 128 == 0

    flops = 2 * M * K1 * NP + 2 * M * NP * NP
    bytes_accessed = (p.size * 2 + w1p.size * 2 + w2p.size * 2
                      + (b1p.size + b2p.size) * 4 + M * NP * 4)

    return pl.pallas_call(
        _fused_adaptation_kernel,
        out_shape=jax.ShapeDtypeStruct((M, NP), jnp.float32),
        grid=(M // tm,),
        in_specs=[
            pl.BlockSpec((tm, K1), lambda i: (i, 0)),   # row tile of im2col matrix
            pl.BlockSpec((K1, NP), lambda i: (0, 0)),   # conv weight (resident)
            pl.BlockSpec((1, NP), lambda i: (0, 0)),    # conv bias
            pl.BlockSpec((NP, NP), lambda i: (0, 0)),   # tconv weight (resident)
            pl.BlockSpec((1, NP), lambda i: (0, 0)),    # tconv bias (per-column)
        ],
        out_specs=pl.BlockSpec((tm, NP), lambda i: (i, 0)),
        compiler_params=pltpu.CompilerParams(
            dimension_semantics=("parallel",),
            vmem_limit_bytes=32 * 1024 * 1024,
        ),
        cost_estimate=pl.CostEstimate(
            flops=flops, transcendentals=0, bytes_accessed=bytes_accessed),
    )(p, w1p, b1p, w2p, b2p)


# ----------------------------------------------------------------------------
# Net.forward_adaptation  (and the adaptation stage of Net.forward)
# ----------------------------------------------------------------------------
def forward_adaptation(x, params, key_size):
    k = key_size
    N, C, H, W = x.shape
    w1 = params["conv_w"]        # (Cmid, C, k, k)
    b1 = params["conv_b"]        # (Cmid,)
    w2 = params["tconv_w"]       # (Cmid, Cout, k, k)
    b2 = params["tconv_b"]       # (Cout,)
    Cmid = w1.shape[0]
    Cout = w2.shape[1]

    Ho = (H + 2 - k) // k + 1
    Wo = (W + 2 - k) // k + 1
    K1 = C * k * k               # im2col feature width (48 for k=4)
    N2 = Cout * k * k            # tconv column width   (48 for k=4)
    NP = _round_up(max(Cmid, N2), 128)   # lane-dense padded width

    # ---- im2col: one pad + reshape + ONE transpose (space-to-depth) ---------
    xp = jnp.pad(x, ((0, 0), (0, 0), (1, 1), (1, 1)))[:, :, :Ho * k, :Wo * k]
    p = xp.reshape(N, C, Ho, k, Wo, k).transpose(0, 2, 4, 1, 3, 5)
    p = p.reshape(N * Ho * Wo, K1).astype(jnp.bfloat16)

    M = N * Ho * Wo
    tm = min(512, _round_up(M, 16))      # row tile; multiple of 16 (bf16 sublanes)
    M_pad = _round_up(M, tm)
    if M_pad != M:
        p = jnp.pad(p, ((0, M_pad - M), (0, 0)))

    # ---- fold conv / tconv weights to 2-D and zero-pad to NP lanes ----------
    w1_2d = w1.reshape(Cmid, K1).T.astype(jnp.bfloat16)          # [K1, Cmid]
    w1p = jnp.zeros((K1, NP), jnp.bfloat16).at[:, :Cmid].set(w1_2d)
    b1p = jnp.zeros((1, NP), jnp.float32).at[:, :Cmid].set(b1)
    w2_2d = w2.reshape(Cmid, N2).astype(jnp.bfloat16)            # [Cmid, N2] (co,kh,kw)
    w2p = jnp.zeros((NP, NP), jnp.bfloat16).at[:Cmid, :N2].set(w2_2d)
    b2p = jnp.zeros((1, NP), jnp.float32).at[:, :N2].set(jnp.repeat(b2, k * k))

    out2d = _fused_matmul(p, w1p, b1p, w2p, b2p, tm=tm)          # [M_pad, NP] f32

    # ---- col2im: slice valid rows/cols, one relayout back to NCHW -----------
    # TODO(synk): this final 6-D transpose is plain-XLA glue; it could be folded
    # into the kernel's output DMA with a custom out layout if NCHW is kept.
    out = out2d[:M, :N2].reshape(N, Ho, Wo, Cout, k, k)
    out = out.transpose(0, 3, 1, 4, 2, 5).reshape(N, Cout, Ho * k, Wo * k)
    return out


def init_params(key_size, seed=0):
    """Deterministic parameter init (shapes match the PyTorch module)."""
    k = key_size
    cmid = k * k * 3
    rng = jax.random.PRNGKey(seed)
    r1, r2, r3, r4 = jax.random.split(rng, 4)
    fan_in_c = 3 * k * k
    fan_in_t = cmid * k * k
    return {
        "conv_w": jax.random.uniform(r1, (cmid, 3, k, k), jnp.float32,
                                     -1.0 / fan_in_c ** 0.5, 1.0 / fan_in_c ** 0.5),
        "conv_b": jax.random.uniform(r2, (cmid,), jnp.float32,
                                     -1.0 / fan_in_c ** 0.5, 1.0 / fan_in_c ** 0.5),
        "tconv_w": jax.random.uniform(r3, (cmid, 3, k, k), jnp.float32,
                                      -1.0 / fan_in_t ** 0.5, 1.0 / fan_in_t ** 0.5),
        "tconv_b": jax.random.uniform(r4, (3,), jnp.float32,
                                      -1.0 / fan_in_t ** 0.5, 1.0 / fan_in_t ** 0.5),
    }


# ----------------------------------------------------------------------------
# Pure-JAX f32 reference (silent correctness check; bf16 MXU inputs -> loose tol)
# ----------------------------------------------------------------------------
def _reference(x, params, k):
    h = jax.lax.conv_general_dilated(
        x, params["conv_w"], window_strides=(k, k), padding=[(1, 1), (1, 1)],
        dimension_numbers=("NCHW", "OIHW", "NCHW"),
    ) + params["conv_b"][None, :, None, None]
    N, Cin, Ho, Wo = h.shape
    Cout = params["tconv_w"].shape[1]
    o = jnp.einsum("ncij,cokl->noikjl", h, params["tconv_w"]).reshape(
        N, Cout, Ho * k, Wo * k
    ) + params["tconv_b"][None, :, None, None]
    return o


if __name__ == "__main__":
    key_size = 4
    x = jax.random.normal(jax.random.PRNGKey(0), (2, 3, 16, 16), jnp.float32)
    params = init_params(key_size)

    out = forward_adaptation(x, params, key_size)
    out = jax.block_until_ready(out)
    assert out.shape == (2, 3, 16, 16), out.shape

    ref = _reference(x, params, key_size)
    # bf16 MXU inputs with f32 accumulation -> tolerance loosened vs pure-f32.
    assert jnp.allclose(out, ref, atol=5e-2, rtol=5e-2), "mismatch vs JAX reference"

    print("KERNEL_OK")
</pallas_src>

<mosaic_0001>
module attributes {stable_mosaic.version = 11 : i64} {
  func.func @_fused_adaptation_kernel(%arg0: i32, %arg1: memref<32x48xbf16, #tpu.memory_space<vmem>>, %arg2: memref<48x128xbf16, #tpu.memory_space<vmem>>, %arg3: memref<1x128xf32, #tpu.memory_space<vmem>>, %arg4: memref<128x128xbf16, #tpu.memory_space<vmem>>, %arg5: memref<1x128xf32, #tpu.memory_space<vmem>>, %arg6: memref<32x128xf32, #tpu.memory_space<vmem>>) attributes {dimension_semantics = [#tpu.dimension_semantics<parallel>], iteration_bounds = array<i64: 1>, scalar_prefetch = 0 : i64, scratch_operands = 0 : i64, tpu.core_type = #tpu.core_type<tc>, window_params = [{transform_indices = @transform_0, window_bounds = array<i64: 32, 48>}, {pipeline_mode = #tpu.pipeline_mode<synchronous>, transform_indices = @transform_1, window_bounds = array<i64: 48, 128>}, {pipeline_mode = #tpu.pipeline_mode<synchronous>, transform_indices = @transform_2, window_bounds = array<i64: 1, 128>}, {pipeline_mode = #tpu.pipeline_mode<synchronous>, transform_indices = @transform_3, window_bounds = array<i64: 128, 128>}, {pipeline_mode = #tpu.pipeline_mode<synchronous>, transform_indices = @transform_4, window_bounds = array<i64: 1, 128>}, {transform_indices = @transform_5, window_bounds = array<i64: 32, 128>}]} {
    %c0 = arith.constant 0 : index
    %c0_0 = arith.constant 0 : index
    %0 = vector.load %arg1[%c0, %c0_0] : memref<32x48xbf16, #tpu.memory_space<vmem>>, vector<32x48xbf16>
    %c0_1 = arith.constant 0 : index
    %c0_2 = arith.constant 0 : index
    %1 = vector.load %arg2[%c0_1, %c0_2] : memref<48x128xbf16, #tpu.memory_space<vmem>>, vector<48x128xbf16>
    %cst = arith.constant dense<0.000000e+00> : vector<32x128xf32>
    %2 = tpu.matmul %0, %1, %cst {dimension_numbers = #tpu.dot_dimension_numbers<[1], [0], [0], [1], [0, 0, 1, 1], [], []>} : vector<32x48xbf16>, vector<48x128xbf16>, vector<32x128xf32> -> vector<32x128xf32>
    %c0_3 = arith.constant 0 : index
    %c0_4 = arith.constant 0 : index
    %3 = vector.load %arg3[%c0_3, %c0_4] : memref<1x128xf32, #tpu.memory_space<vmem>>, vector<1x128xf32>
    %4 = vector.broadcast %3 : vector<1x128xf32> to vector<32x128xf32>
    %5 = arith.addf %2, %4 : vector<32x128xf32>
    %6 = arith.truncf %5 : vector<32x128xf32> to vector<32x128xbf16>
    %c0_5 = arith.constant 0 : index
    %c0_6 = arith.constant 0 : index
    %7 = vector.load %arg4[%c0_5, %c0_6] : memref<128x128xbf16, #tpu.memory_space<vmem>>, vector<128x128xbf16>
    %cst_7 = arith.constant dense<0.000000e+00> : vector<32x128xf32>
    %8 = tpu.matmul %6, %7, %cst_7 {dimension_numbers = #tpu.dot_dimension_numbers<[1], [0], [0], [1], [0, 0, 1, 1], [], []>} : vector<32x128xbf16>, vector<128x128xbf16>, vector<32x128xf32> -> vector<32x128xf32>
    %c0_8 = arith.constant 0 : index
    %c0_9 = arith.constant 0 : index
    %9 = vector.load %arg5[%c0_8, %c0_9] : memref<1x128xf32, #tpu.memory_space<vmem>>, vector<1x128xf32>
    %10 = vector.broadcast %9 : vector<1x128xf32> to vector<32x128xf32>
    %11 = arith.addf %8, %10 : vector<32x128xf32>
    %c0_10 = arith.constant 0 : index
    %c0_11 = arith.constant 0 : index
    %12 = vector.load %arg6[%c0_10, %c0_11] : memref<32x128xf32, #tpu.memory_space<vmem>>, vector<32x128xf32>
    tpu.vector_store %arg6[%c0_10, %c0_11], %11 {strides = array<i32>} : memref<32x128xf32, #tpu.memory_space<vmem>>, vector<32x128xf32>,
    return
  }
  func.func @transform_0(%arg0: i32) -> (i32, i32) {
    %c0_i32 = arith.constant 0 : i32
    %c0_i32_0 = arith.constant 0 : i32
    return %arg0, %c0_i32 : i32, i32
  }
  func.func @transform_1(%arg0: i32) -> (i32, i32) {
    %c0_i32 = arith.constant 0 : i32
    %c0_i32_0 = arith.constant 0 : i32
    %c0_i32_1 = arith.constant 0 : i32
    return %c0_i32, %c0_i32_0 : i32, i32
  }
  func.func @transform_2(%arg0: i32) -> (i32, i32) {
    %c0_i32 = arith.constant 0 : i32
    %c0_i32_0 = arith.constant 0 : i32
    %c0_i32_1 = arith.constant 0 : i32
    return %c0_i32, %c0_i32_0 : i32, i32
  }
  func.func @transform_3(%arg0: i32) -> (i32, i32) {
    %c0_i32 = arith.constant 0 : i32
    %c0_i32_0 = arith.constant 0 : i32
    %c0_i32_1 = arith.constant 0 : i32
    return %c0_i32, %c0_i32_0 : i32, i32
  }
  func.func @transform_4(%arg0: i32) -> (i32, i32) {
    %c0_i32 = arith.constant 0 : i32
    %c0_i32_0 = arith.constant 0 : i32
    %c0_i32_1 = arith.constant 0 : i32
    return %c0_i32, %c0_i32_0 : i32, i32
  }
  func.func @transform_5(%arg0: i32) -> (i32, i32) {
    %c0_i32 = arith.constant 0 : i32
    %c0_i32_0 = arith.constant 0 : i32
    return %arg0, %c0_i32 : i32, i32
  }
}

</mosaic_0001>

<llo_original>
// kernel: tpu_custom_call.1
$region0: #{tpu_custom_call.1}
  #allocation0 [shape = 'u32[]', space=smem, size = 0x4, offset = 0x4, fixed_abs, tag = 'smem constant byte address 0x4 - core index']
  #allocation1 [shape = 'u32[144,128]{1,0:T(1,128)}', space=vmem, size = 0x12000, scoped, tag = 'internal scratch']
  %s0 = inlined_call_operand.hbm [shape: bf16[32,48], index: 0, kind: input, shape index: {}]
  %s1 = inlined_call_operand.hbm [shape: bf16[48,128], index: 1, kind: input, shape index: {}]
  %s2 = inlined_call_operand.vmem [shape: f32[1,128], index: 2, kind: input, shape index: {}]
  %s3 = inlined_call_operand.hbm [shape: bf16[128,128], index: 3, kind: input, shape index: {}]
  %s4 = inlined_call_operand.vmem [shape: f32[1,128], index: 4, kind: input, shape index: {}]
  %s5 = inlined_call_operand.hbm [shape: f32[32,128], index: 5, kind: output, shape index: {}]
  %s6 = sld [smem:[#allocation0]]
  $region42: #{tpu_custom_call.1} parent=0
    _
  %s8 = ssub.s32 1, %s6
  %s9 = scalar_select 0, %s8, %s6
  $region1: #{tpu_custom_call.1} parent=0
    #allocation2 [shape = 'u8[8192]{0}', space=vmem, size = 0x2000, scoped, tag = 'input window, operand 0, single buffered']
    #allocation3 [shape = 's32[1]{0}', space=sflag, size = 0x4, scoped, tag = 'scoped memory for tpu_custom_call.1']
    #allocation4 [shape = 's32[1]{0}', space=sflag, size = 0x4, scoped, tag = 'scoped memory for tpu_custom_call.1']
    #allocation5 [shape = 'u8[12288]{0}', space=vmem, size = 0x3000, scoped, tag = 'input window, operand 1, single buffered']
    #allocation6 [shape = 's32[1]{0}', space=sflag, size = 0x4, scoped, tag = 'scoped memory for tpu_custom_call.1']
    #allocation7 [shape = 'u8[32768]{0}', space=vmem, size = 0x8000, scoped, tag = 'input window, operand 3, single buffered']
    #allocation8 [shape = 'u8[16384]{0}', space=vmem, size = 0x4000, scoped, tag = 'output window, operand 0, single buffered']
    %10 = vsyncpa [#allocation3], 0
    %11 = vsyncpa [#allocation6], 0
    %12 = vsyncpa [#allocation4], 0
    // Predicated region
    $region2: #{tpu_custom_call.1} parent=1 // pred_check
      _
    $region3: #{tpu_custom_call.1} parent=1 // pred_check_branch
      %14 = sbr.rel (0) target = $region5
    $region4: #{tpu_custom_call.1} parent=1 // pred_region
      %s16 = ssub.s32 256, 256
      %17 = vsyncadd [#allocation3], %s16
      %s18 = sshll.u32 [#allocation2], 4
      %s19 = int_to_ptr.vmem [resolvable:$true] %s18
      %24 = dma.hbm_to_vmem [thread:$0]  %s0, 256, %s19, [#allocation3], 64, 64, 4
    $region5: #{tpu_custom_call.1} parent=1 // pred_fallthru
      _
    // Predicated region
    $region6: #{tpu_custom_call.1} parent=1 // pred_check
      _
    $region7: #{tpu_custom_call.1} parent=1 // pred_check_branch
      %26 = sbr.rel (0) target = $region9
    $region8: #{tpu_custom_call.1} parent=1 // pred_region
      %s28 = ssub.s32 384, 384
      %29 = vsyncadd [#allocation6], %s28
      %s30 = sshll.u32 [#allocation5], 4
      %s31 = int_to_ptr.vmem [resolvable:$true] %s30
      %36 = dma.hbm_to_vmem [thread:$0]  %s1, 384, %s31, [#allocation6], 64, 64, 4
    $region9: #{tpu_custom_call.1} parent=1 // pred_fallthru
      _
    // Predicated region
    $region10: #{tpu_custom_call.1} parent=1 // pred_check
      _
    $region11: #{tpu_custom_call.1} parent=1 // pred_check_branch
      %38 = sbr.rel (0) target = $region13
    $region12: #{tpu_custom_call.1} parent=1 // pred_region
      _
    $region13: #{tpu_custom_call.1} parent=1 // pred_fallthru
      _
    // Predicated region
    $region14: #{tpu_custom_call.1} parent=1 // pred_check
      _
    $region15: #{tpu_custom_call.1} parent=1 // pred_check_branch
      %40 = sbr.rel (0) target = $region17
    $region16: #{tpu_custom_call.1} parent=1 // pred_region
      %s42 = ssub.s32 1024, 1024
      %43 = vsyncadd [#allocation6], %s42
      %s44 = sshll.u32 [#allocation7], 4
      %s45 = int_to_ptr.vmem [resolvable:$true] %s44
      %50 = dma.hbm_to_vmem [thread:$0]  %s3, 1024, %s45, [#allocation6], 64, 64, 4
    $region17: #{tpu_custom_call.1} parent=1 // pred_fallthru
      _
    // Predicated region
    $region18: #{tpu_custom_call.1} parent=1 // pred_check
      _
    $region19: #{tpu_custom_call.1} parent=1 // pred_check_branch
      %52 = sbr.rel (0) target = $region21
    $region20: #{tpu_custom_call.1} parent=1 // pred_region
      _
    $region21: #{tpu_custom_call.1} parent=1 // pred_fallthru
      _
    // Predicated region
    $region22: #{tpu_custom_call.1} parent=1 // pred_check
      _
    $region23: #{tpu_custom_call.1} parent=1 // pred_check_branch
      %54 = sbr.rel (0) target = $region25
    $region24: #{tpu_custom_call.1} parent=1 // pred_region
      %55 = dma.done [#allocation3], 256
    $region25: #{tpu_custom_call.1} parent=1 // pred_fallthru
      _
    // Predicated region
    $region26: #{tpu_custom_call.1} parent=1 // pred_check
      _
    $region27: #{tpu_custom_call.1} parent=1 // pred_check_branch
      %57 = sbr.rel (0) target = $region29
    $region28: #{tpu_custom_call.1} parent=1 // pred_region
      %58 = dma.done [#allocation6], 384
    $region29: #{tpu_custom_call.1} parent=1 // pred_fallthru
      _
    // Predicated region
    $region30: #{tpu_custom_call.1} parent=1 // pred_check
      _
    $region31: #{tpu_custom_call.1} parent=1 // pred_check_branch
      %60 = sbr.rel (0) target = $region33
    $region32: #{tpu_custom_call.1} parent=1 // pred_region
      %61 = dma.done [#allocation6], 1024
    $region33: #{tpu_custom_call.1} parent=1 // pred_fallthru
      _
    %v63 = vld [vmem:[#allocation2] sm:$0xf]
    %v64 = vld [vmem:[#allocation2 + $0x4] sm:$0xf]
    %v65 = vld [vmem:[#allocation2 + $0x8] sm:$0xf]
    %v66 = vld [vmem:[#allocation2 + $0xc] sm:$0xf]
    %v67 = vld [vmem:[#allocation5] sm:$0xf]
    %v68 = vld [vmem:[#allocation5 + $0x4] sm:$0xf]
    %v69 = vld [vmem:[#allocation5 + $0x8] sm:$0xf]
    %v70 = vld [vmem:[#allocation5 + $0xc] sm:$0xf]
    %v71 = vld [vmem:[#allocation5 + $0x10] sm:$0xf]
    %v72 = vld [vmem:[#allocation5 + $0x14] sm:$0xf]
    %v73 = vld [vmem:[%s2] sm:$0x1]
    %v75 = vlaneseq
    %v76 = vshrl.u32 %v75, 7
    %v77 = vsub.s32 0, %v76
    %v78 = vrot.slane %v73, %v77
    %v84 = vunpack.c.l.b16 %v63
    %v85 = vunpack.c.l.b16 %v64
    %v86 = vunpack.c.l.b16 %v65
    %v87 = vunpack.c.l.b16 %v66
    %v88 = vpack.c.b16 %v85, %v84
    %v89 = vpack.c.b16 %v87, %v86
    %v96 = vunpack.c.l.b16 %v67
    %v97 = vunpack.c.l.b16 %v68
    %v98 = vunpack.c.l.b16 %v69
    %v99 = vunpack.c.l.b16 %v70
    %v100 = vunpack.c.l.b16 %v71
    %v101 = vunpack.c.l.b16 %v72
    %v102 = vpack.c.b16 %v97, %v96
    %v103 = vpack.c.b16 %v99, %v98
    %v104 = vpack.c.b16 %v101, %v100
    %vm108 = vcmask 392192
    %v110 = vsel %vm108, %v88, 0
    %v113 = vsel %vm108, %v89, 0
    %115 = vmatprep.subr.bf16.mxu0 0
    %116 = vmatpush1.bf16.msra.mxu0 0
    %117 = vmatprep.subr.bf16.mxu0 0
    %118 = vmatpush1.bf16.msra.mxu0 0
    %119 = vmatprep.subr.bf16.mxu0 0
    %120 = vmatpush1.bf16.msra.mxu0 0
    %121 = vmatprep.subr.bf16.mxu0 0
    %122 = vmatpush1.bf16.msra.mxu0 0
    %123 = vmatprep.subr.bf16.mxu0 0
    %124 = vmatpush1.bf16.msra.mxu0 0
    %125 = vmatprep.subr.bf16.mxu0 0
    %126 = vmatpush1.bf16.msra.mxu0 %v104
    %127 = vmatprep.subr.bf16.mxu0 0
    %128 = vmatpush1.bf16.msra.mxu0 %v103
    %129 = vmatprep.subr.bf16.mxu0 0
    %130 = vmatpush1.bf16.msra.mxu0 %v102
    %131 = vmatprep.subr.bf16.mxu0 0
    %132 = vmatpush2.bf16.msra.mxu0 0
    %133 = vmatprep.subr.bf16.mxu0 0
    %134 = vmatpush2.bf16.msra.mxu0 0
    %135 = vmatprep.subr.bf16.mxu0 0
    %136 = vmatpush2.bf16.msra.mxu0 0
    %137 = vmatprep.subr.bf16.mxu0 0
    %138 = vmatpush2.bf16.msra.mxu0 0
    %139 = vmatprep.subr.bf16.mxu0 0
    %140 = vmatpush2.bf16.msra.mxu0 0
    %141 = vmatprep.subr.bf16.mxu0 0
    %142 = vmatpush2.bf16.msra.mxu0 0
    %143 = vmatprep.subr.bf16.mxu0 0
    %144 = vmatpush2.bf16.msra.mxu0 0
    %145 = vmatprep.subr.bf16.mxu0 0
    %146 = vmatpush2.bf16.msra.mxu0 0
    %147 = vmatprep.mubr.bf16.mxu0 0
    %148 = vmatmul.mubr.bf16.gmra.mxu0 %v110
    %v149 = vpop.f32.mrf.mxu0
    %v150 = vadd.f32 %v78, %v149
    %v151 = vpop.f32.mrf.mxu0
    %v152 = vpop.f32.mrf.mxu0
    %v153 = vadd.f32 %v78, %v152
    %v154 = vpop.f32.mrf.mxu0
    %155 = vmatprep.mubr.bf16.mxu0 0
    %156 = vmatmul.mubr.bf16.gmra.mxu0 %v113
    %v157 = vpop.f32.mrf.mxu0
    %v158 = vadd.f32 %v78, %v157
    %v159 = vpop.f32.mrf.mxu0
    %v160 = vpop.f32.mrf.mxu0
    %v161 = vadd.f32 %v78, %v160
    %v162 = vpop.f32.mrf.mxu0
    %163 = vdwg.mxu0
    %v164 = vpack.c.bf16 %v153, %v150
    %v165 = vpack.c.bf16 %v161, %v158
    %v166 = vld [vmem:[#allocation7] sm:$0xf]
    %v167 = vld [vmem:[#allocation7 + $0x4] sm:$0xf]
    %v168 = vld [vmem:[#allocation7 + $0x8] sm:$0xf]
    %v169 = vld [vmem:[#allocation7 + $0xc] sm:$0xf]
    %v170 = vld [vmem:[#allocation7 + $0x10] sm:$0xf]
    %v171 = vld [vmem:[#allocation7 + $0x14] sm:$0xf]
    %v172 = vld [vmem:[#allocation7 + $0x18] sm:$0xf]
    %v173 = vld [vmem:[#allocation7 + $0x1c] sm:$0xf]
    %v174 = vld [vmem:[#allocation7 + $0x20] sm:$0xf]
    %v175 = vld [vmem:[#allocation7 + $0x24] sm:$0xf]
    %v176 = vld [vmem:[#allocation7 + $0x28] sm:$0xf]
    %v177 = vld [vmem:[#allocation7 + $0x2c] sm:$0xf]
    %v178 = vld [vmem:[#allocation7 + $0x30] sm:$0xf]
    %v179 = vld [vmem:[#allocation7 + $0x34] sm:$0xf]
    %v180 = vld [vmem:[#allocation7 + $0x38] sm:$0xf]
    %v181 = vld [vmem:[#allocation7 + $0x3c] sm:$0xf]
    %v182 = vld [vmem:[%s4] sm:$0x1]
    %v184 = vlaneseq
    %v185 = vshrl.u32 %v184, 7
    %v186 = vsub.s32 0, %v185
    %v187 = vrot.slane %v182, %v186
    %v205 = vunpack.c.l.b16 %v166
    %v206 = vunpack.c.l.b16 %v167
    %v207 = vunpack.c.l.b16 %v168
    %v208 = vunpack.c.l.b16 %v169
    %v209 = vunpack.c.l.b16 %v170
    %v210 = vunpack.c.l.b16 %v171
    %v211 = vunpack.c.l.b16 %v172
    %v212 = vunpack.c.l.b16 %v173
    %v213 = vunpack.c.l.b16 %v174
    %v214 = vunpack.c.l.b16 %v175
    %v215 = vunpack.c.l.b16 %v176
    %v216 = vunpack.c.l.b16 %v177
    %v217 = vunpack.c.l.b16 %v178
    %v218 = vunpack.c.l.b16 %v179
    %v219 = vunpack.c.l.b16 %v180
    %v220 = vunpack.c.l.b16 %v181
    %v221 = vpack.c.b16 %v206, %v205
    %v222 = vpack.c.b16 %v208, %v207
    %v223 = vpack.c.b16 %v210, %v209
    %v224 = vpack.c.b16 %v212, %v211
    %v225 = vpack.c.b16 %v214, %v213
    %v226 = vpack.c.b16 %v216, %v215
    %v227 = vpack.c.b16 %v218, %v217
    %v228 = vpack.c.b16 %v220, %v219
    %237 = vmatprep.subr.bf16.mxu0 0
    %238 = vmatpush1.bf16.msra.mxu0 %v228
    %239 = vmatprep.subr.bf16.mxu0 0
    %240 = vmatpush1.bf16.msra.mxu0 %v227
    %241 = vmatprep.subr.bf16.mxu0 0
    %242 = vmatpush1.bf16.msra.mxu0 %v226
    %243 = vmatprep.subr.bf16.mxu0 0
    %244 = vmatpush1.bf16.msra.mxu0 %v225
    %245 = vmatprep.subr.bf16.mxu0 0
    %246 = vmatpush1.bf16.msra.mxu0 %v224
    %247 = vmatprep.subr.bf16.mxu0 0
    %248 = vmatpush1.bf16.msra.mxu0 %v223
    %249 = vmatprep.subr.bf16.mxu0 0
    %250 = vmatpush1.bf16.msra.mxu0 %v222
    %251 = vmatprep.subr.bf16.mxu0 0
    %252 = vmatpush1.bf16.msra.mxu0 %v221
    %253 = vmatprep.subr.bf16.mxu0 0
    %254 = vmatpush2.bf16.msra.mxu0 0
    %255 = vmatprep.subr.bf16.mxu0 0
    %256 = vmatpush2.bf16.msra.mxu0 0
    %257 = vmatprep.subr.bf16.mxu0 0
    %258 = vmatpush2.bf16.msra.mxu0 0
    %259 = vmatprep.subr.bf16.mxu0 0
    %260 = vmatpush2.bf16.msra.mxu0 0
    %261 = vmatprep.subr.bf16.mxu0 0
    %262 = vmatpush2.bf16.msra.mxu0 0
    %263 = vmatprep.subr.bf16.mxu0 0
    %264 = vmatpush2.bf16.msra.mxu0 0
    %265 = vmatprep.subr.bf16.mxu0 0
    %266 = vmatpush2.bf16.msra.mxu0 0
    %267 = vmatprep.subr.bf16.mxu0 0
    %268 = vmatpush2.bf16.msra.mxu0 0
    %269 = vmatprep.mubr.bf16.mxu0 0
    %270 = vmatmul.mubr.bf16.gmra.mxu0 %v164
    %v271 = vpop.f32.mrf.mxu0
    %v272 = vadd.f32 %v187, %v271
    %v273 = vpop.f32.mrf.mxu0
    %v274 = vpop.f32.mrf.mxu0
    %v275 = vadd.f32 %v187, %v274
    %v276 = vpop.f32.mrf.mxu0
    %277 = vmatprep.mubr.bf16.mxu0 0
    %278 = vmatmul.mubr.bf16.gmra.mxu0 %v165
    %v279 = vpop.f32.mrf.mxu0
    %v280 = vadd.f32 %v187, %v279
    %v281 = vpop.f32.mrf.mxu0
    %v282 = vpop.f32.mrf.mxu0
    %v283 = vadd.f32 %v187, %v282
    %v284 = vpop.f32.mrf.mxu0
    %285 = vdwg.mxu0
    %286 = vst [vmem:[#allocation8] sm:$0xff] %v272
    %287 = vst [vmem:[#allocation8 + $0x8] sm:$0xff] %v275
    %288 = vst [vmem:[#allocation8 + $0x10] sm:$0xff] %v280
    %289 = vst [vmem:[#allocation8 + $0x18] sm:$0xff] %v283
    // Predicated region
    $region34: #{tpu_custom_call.1} parent=1 // pred_check
      _
    $region35: #{tpu_custom_call.1} parent=1 // pred_check_branch
      %291 = sbr.rel (0) target = $region37
    $region36: #{tpu_custom_call.1} parent=1 // pred_region
      %s293 = ssub.s32 512, 512
      %294 = vsyncadd [#allocation4], %s293
      %s295 = sshll.u32 [#allocation8], 4
      %s296 = int_to_ptr.vmem [resolvable:$true] %s295
      %301 = dma.vmem_to_hbm [thread:$0]  %s296, 512, %s5, [#allocation4], 128, 128, 8
    $region37: #{tpu_custom_call.1} parent=1 // pred_fallthru
      _
    // Predicated region
    $region38: #{tpu_custom_call.1} parent=1 // pred_check
      _
    $region39: #{tpu_custom_call.1} parent=1 // pred_check_branch
      %303 = sbr.rel (0) target = $region41
    $region40: #{tpu_custom_call.1} parent=1 // pred_region
      %304 = dma.done [#allocation4], 512
    $region41: #{tpu_custom_call.1} parent=1 // pred_fallthru
      _
    %305 = vsyncpa [#allocation3], 1
    %306 = vsyncpa [#allocation6], 1
    %307 = vsyncpa [#allocation4], 1

</llo_original>
